<compile_context>
chip_gen: v7x
topology: tpu7x:2x2x1
jax: 0.10.0
libtpu: 0.0.40
codegen_flags: <defaults>
</compile_context>

<pallas_src>
import functools

import jax
import jax.numpy as jnp
from jax.experimental import pallas as pl
from jax.experimental.pallas import tpu as pltpu


def gemm_relu_div_kernel(x_ref, w_ref, b_ref, o_ref, *, inv_divisor):
    """One grid step computes a full (tm, tn) output tile (K is not tiled)."""
    # x_ref: (tm, K), w_ref: (tn, K)  ->  contract on K (dim 1 of both).
    acc = jax.lax.dot_general(
        x_ref[...],
        w_ref[...],
        dimension_numbers=(((1,), (1,)), ((), ())),
        preferred_element_type=jnp.float32,
    )
    out = jnp.maximum(acc + b_ref[...], 0.0) * inv_divisor
    o_ref[...] = out.astype(o_ref.dtype)


@functools.partial(jax.jit, static_argnames=("divisor", "tm", "tn"))
def gemm_relu_div(x, weight, bias, divisor, *, tm=None, tn=256):
    """x: (B, K) f32, weight: (N, K) f32, bias: (N,) f32 -> (B, N) f32."""
    B, K = x.shape
    N, K2 = weight.shape
    assert K == K2, (K, K2)

    if tm is None:
        tm = min(128, B)
    if N % tn != 0:
        tn = N
    assert B % tm == 0 and N % tn == 0, (B, tm, N, tn)

    b2 = bias.reshape(1, N)  # 2-D for a TPU-friendly (1, tn) bias block

    kernel = functools.partial(
        gemm_relu_div_kernel, inv_divisor=1.0 / float(divisor)
    )

    cost = pl.CostEstimate(
        flops=2 * B * N * K,
        transcendentals=0,
        bytes_accessed=(B * K + K * N + B * N) * 4,
    )

    return pl.pallas_call(
        kernel,
        out_shape=jax.ShapeDtypeStruct((B, N), x.dtype),
        grid_spec=pltpu.PrefetchScalarGridSpec(
            num_scalar_prefetch=0,
            grid=(B // tm, N // tn),
            in_specs=[
                pl.BlockSpec((tm, K), lambda i, j: (i, 0)),   # x tile (full K)
                pl.BlockSpec((tn, K), lambda i, j: (j, 0)),   # weight in native (N, K)
                pl.BlockSpec((1, tn), lambda i, j: (0, j)),   # bias tile
            ],
            out_specs=pl.BlockSpec((tm, tn), lambda i, j: (i, j)),
        ),
        compiler_params=pltpu.CompilerParams(
            dimension_semantics=("parallel", "parallel")
        ),
        cost_estimate=cost,
    )(x, weight, b2)


if __name__ == "__main__":
    divisor = 2.0
    in_features = 1024
    out_features = 512
    batch = 8

    key = jax.random.PRNGKey(0)
    kx, kw, kb = jax.random.split(key, 3)

    x = jax.random.normal(kx, (batch, in_features), dtype=jnp.float32)
    # Deterministic nn.Linear-style init: U(-1/sqrt(in), 1/sqrt(in))
    bound = 1.0 / (in_features ** 0.5)
    weight = jax.random.uniform(
        kw, (out_features, in_features), minval=-bound, maxval=bound, dtype=jnp.float32
    )
    bias = jax.random.uniform(
        kb, (out_features,), minval=-bound, maxval=bound, dtype=jnp.float32
    )

    out = gemm_relu_div(x, weight, bias, divisor)
    out = jax.block_until_ready(out)

    # Reference check in plain JAX
    ref = jnp.maximum(x @ weight.T + bias, 0.0) / divisor
    assert out.shape == (batch, out_features), out.shape
    assert jnp.allclose(out, ref, atol=1e-4, rtol=1e-4), float(
        jnp.max(jnp.abs(out - ref))
    )
    print("KERNEL_OK")
</pallas_src>

<mosaic_0001>
module attributes {stable_mosaic.version = 11 : i64} {
  func.func @gemm_relu_div_kernel(%arg0: i32, %arg1: i32, %arg2: memref<8x1024xf32, #tpu.memory_space<vmem>>, %arg3: memref<256x1024xf32, #tpu.memory_space<vmem>>, %arg4: memref<1x256xf32, #tpu.memory_space<vmem>>, %arg5: memref<8x256xf32, #tpu.memory_space<vmem>>) attributes {dimension_semantics = [#tpu.dimension_semantics<parallel>, #tpu.dimension_semantics<parallel>], iteration_bounds = array<i64: 1, 2>, scalar_prefetch = 0 : i64, scratch_operands = 0 : i64, tpu.core_type = #tpu.core_type<tc>, window_params = [{transform_indices = @transform_0, window_bounds = array<i64: 8, 1024>}, {transform_indices = @transform_1, window_bounds = array<i64: 256, 1024>}, {transform_indices = @transform_2, window_bounds = array<i64: 1, 256>}, {transform_indices = @transform_3, window_bounds = array<i64: 8, 256>}]} {
    %c0 = arith.constant 0 : index
    %c0_0 = arith.constant 0 : index
    %0 = vector.load %arg2[%c0, %c0_0] : memref<8x1024xf32, #tpu.memory_space<vmem>>, vector<8x1024xf32>
    %c0_1 = arith.constant 0 : index
    %c0_2 = arith.constant 0 : index
    %1 = vector.load %arg3[%c0_1, %c0_2] : memref<256x1024xf32, #tpu.memory_space<vmem>>, vector<256x1024xf32>
    %cst = arith.constant dense<0.000000e+00> : vector<8x256xf32>
    %2 = tpu.matmul %0, %1, %cst {dimension_numbers = #tpu.dot_dimension_numbers<[1], [1], [0], [0], [0, 0, 1, 0], [], []>} : vector<8x1024xf32>, vector<256x1024xf32>, vector<8x256xf32> -> vector<8x256xf32>
    %c0_3 = arith.constant 0 : index
    %c0_4 = arith.constant 0 : index
    %3 = vector.load %arg4[%c0_3, %c0_4] : memref<1x256xf32, #tpu.memory_space<vmem>>, vector<1x256xf32>
    %4 = vector.broadcast %3 : vector<1x256xf32> to vector<8x256xf32>
    %5 = arith.addf %2, %4 : vector<8x256xf32>
    %cst_5 = arith.constant 0.000000e+00 : f32
    %6 = vector.broadcast %cst_5 : f32 to vector<8x256xf32>
    %7 = arith.maximumf %5, %6 : vector<8x256xf32>
    %cst_6 = arith.constant 5.000000e-01 : f32
    %8 = vector.broadcast %cst_6 : f32 to vector<8x256xf32>
    %9 = arith.mulf %7, %8 : vector<8x256xf32>
    %c0_7 = arith.constant 0 : index
    %c0_8 = arith.constant 0 : index
    %10 = vector.load %arg5[%c0_7, %c0_8] : memref<8x256xf32, #tpu.memory_space<vmem>>, vector<8x256xf32>
    tpu.vector_store %arg5[%c0_7, %c0_8], %9 {strides = array<i32>} : memref<8x256xf32, #tpu.memory_space<vmem>>, vector<8x256xf32>,
    return
  }
  func.func @transform_0(%arg0: i32, %arg1: i32) -> (i32, i32) {
    %c0_i32 = arith.constant 0 : i32
    %c0_i32_0 = arith.constant 0 : i32
    return %arg0, %c0_i32 : i32, i32
  }
  func.func @transform_1(%arg0: i32, %arg1: i32) -> (i32, i32) {
    %c0_i32 = arith.constant 0 : i32
    %c0_i32_0 = arith.constant 0 : i32
    return %arg1, %c0_i32 : i32, i32
  }
  func.func @transform_2(%arg0: i32, %arg1: i32) -> (i32, i32) {
    %c0_i32 = arith.constant 0 : i32
    %c0_i32_0 = arith.constant 0 : i32
    return %c0_i32, %arg1 : i32, i32
  }
  func.func @transform_3(%arg0: i32, %arg1: i32) -> (i32, i32) {
    %c0_i32 = arith.constant 0 : i32
    return %arg0, %arg1 : i32, i32
  }
}

</mosaic_0001>

<llo_original>
// kernel: gemm_relu_div.1
$region0: #{gemm_relu_div.1}
  #allocation0 [shape = 'u32[]', space=smem, size = 0x4, offset = 0x4, fixed_abs, tag = 'smem constant byte address 0x4 - core index']
  #allocation1 [shape = 'u32[144,128]{1,0:T(1,128)}', space=vmem, size = 0x12000, scoped, tag = 'internal scratch']
  %s0 = inlined_call_operand.hbm [shape: f32[8,1024], index: 0, kind: input, shape index: {}]
  %s1 = inlined_call_operand.hbm [shape: f32[512,1024], index: 1, kind: input, shape index: {}]
  %s2 = inlined_call_operand.hbm [shape: f32[1,512], index: 2, kind: input, shape index: {}]
  %s3 = inlined_call_operand.hbm [shape: f32[8,512], index: 3, kind: output, shape index: {}]
  %s4 = sld [smem:[#allocation0]]
  $region57: #{gemm_relu_div.1} parent=0
    _
  %s6 = ssub.s32 1, %s4
  %s7 = scalar_select 0, %s6, %s4
  $region1: #{gemm_relu_div.1} parent=0
    #allocation2 [shape = 'u8[32768]{0}', space=vmem, size = 0x8000, scoped, tag = 'input window, operand 0, single buffered']
    #allocation3 [shape = 's32[2]{0}', space=sflag, size = 0x8, scoped, tag = 'scoped memory for gemm_relu_div.1']
    #allocation4 [shape = 's32[2]{0}', space=sflag, size = 0x8, scoped, tag = 'scoped memory for gemm_relu_div.1']
    #allocation5 [shape = 'u8[2097152]{0}', space=vmem, size = 0x200000, scoped, tag = 'input window, operand 1']
    #allocation6 [shape = 's32[2]{0}', space=sflag, size = 0x8, scoped, tag = 'scoped memory for gemm_relu_div.1']
    #allocation7 [shape = 'u8[2048]{0}', space=vmem, size = 0x800, scoped, tag = 'input window, operand 2']
    #allocation8 [shape = 'u8[16384]{0}', space=vmem, size = 0x4000, scoped, tag = 'output window, operand 0']
    %8 = vsyncpa [#allocation3], 0
    %9 = vsyncpa [#allocation6], 0
    %s10 = scalar_lea.sflag [#allocation6], 1
    %11 = vsyncpa %s10, 0
    %12 = vsyncpa [#allocation4], 0
    %s13 = scalar_lea.sflag [#allocation4], 1
    %14 = vsyncpa %s13, 0
    loop: start=0, step=1, limit=4
    $region2: #{gemm_relu_div.1} parent=1 // loop_pre_header
      _
    $region3: #{gemm_relu_div.1} parent=1 // loop_header
      %s16 = sphi 0, %s20
      %p17 = scmp.ge.s32.totalorder %s16, 4
      %s23 = sphi 0, %s35
      %s24 = sphi 0, %s31
      %s25 = sphi 0, %s23
      %s26 = sphi 0, %s24
      %s27 = sphi 0, %s25
      %s28 = sphi 0, %s26
      %s38 = sphi 0, %s40
      %s41 = sphi 0, %s38
      %s42 = sphi 0, %s41
      %s58 = sphi 0, %s42
      %s64 = sphi 0, %s66
      %s67 = sphi 0, %s64
      %s68 = sphi 0, %s67
      %s84 = sphi 0, %s68
      %s90 = sphi 0, %s92
      %s93 = sphi 0, %s90
      %s94 = sphi 0, %s93
      %s110 = sphi 0, %s94
      %s118 = sphi 0, %s120
      %s121 = sphi 0, %s118
      %s122 = sphi 0, %s121
      %s138 = sphi 0, %s122
    $region4: #{gemm_relu_div.1} parent=1 // loop_header_branch
      %19 = sbr.rel (%p17) target = $region8
    $region5: #{gemm_relu_div.1} parent=1 // loop_body
      %s21 = ssub.s32 %s16, 1
      %s22 = ssub.s32 %s16, 2
      %s29 = sadd.s32 1, %s24
      %p30 = scmp.ge.s32.totalorder %s29, 2
      %s31 = scalar_select %p30, 0, %s29
      %s32 = sadd.s32 1, %s23
      %s33 = scalar_select %p30, %s32, %s23
      %p34 = scmp.ge.s32.totalorder %s33, 1
      %s35 = scalar_select %p34, 0, %s33
      %s36 = ssub.s32 %s23, %s35
      %p37 = scmp.eq.s32.totalorder %s36, 0
      %s39 = sadd.s32 %s38, 1
      %s40 = scalar_select %p37, %s38, %s39
      %p43 = pneg %p37
      %p44 = scmp.eq.s32.totalorder %s16, 1
      %p45 = por %p43, %p44
      %p46 = scmp.ne.s32.totalorder %s38, %s41
      %p47 = scmp.eq.s32.totalorder %s16, 0
      %p48 = por %p46, %p47
      %p49 = scmp.ne.s32.totalorder %s38, %s41
      %p50 = scmp.eq.s32.totalorder %s21, 1
      %p51 = por %p49, %p50
      %p52 = scmp.ne.s32.totalorder %s41, %s42
      %p53 = scmp.eq.s32.totalorder %s21, 0
      %p54 = por %p52, %p53
      %p55 = scmp.ne.s32.totalorder %s41, %s42
      %p56 = scmp.eq.s32.totalorder %s22, 1
      %p57 = por %p55, %p56
      %p59 = scmp.ne.s32.totalorder %s42, %s58
      %p60 = scmp.eq.s32.totalorder %s22, 0
      %p61 = por %p59, %p60
      %s62 = ssub.s32 %s24, %s31
      %p63 = scmp.eq.s32.totalorder %s62, 0
      %s65 = sadd.s32 %s64, 1
      %s66 = scalar_select %p63, %s64, %s65
      %p69 = pneg %p63
      %p70 = scmp.eq.s32.totalorder %s16, 1
      %p71 = por %p69, %p70
      %p72 = scmp.ne.s32.totalorder %s64, %s67
      %p73 = scmp.eq.s32.totalorder %s16, 0
      %p74 = por %p72, %p73
      %p75 = scmp.ne.s32.totalorder %s64, %s67
      %p76 = scmp.eq.s32.totalorder %s21, 1
      %p77 = por %p75, %p76
      %p78 = scmp.ne.s32.totalorder %s67, %s68
      %p79 = scmp.eq.s32.totalorder %s21, 0
      %p80 = por %p78, %p79
      %p81 = scmp.ne.s32.totalorder %s67, %s68
      %p82 = scmp.eq.s32.totalorder %s22, 1
      %p83 = por %p81, %p82
      %p85 = scmp.ne.s32.totalorder %s68, %s84
      %p86 = scmp.eq.s32.totalorder %s22, 0
      %p87 = por %p85, %p86
      %s88 = ssub.s32 %s24, %s31
      %p89 = scmp.eq.s32.totalorder %s88, 0
      %s91 = sadd.s32 %s90, 1
      %s92 = scalar_select %p89, %s90, %s91
      %p95 = pneg %p89
      %p96 = scmp.eq.s32.totalorder %s16, 1
      %p97 = por %p95, %p96
      %p98 = scmp.ne.s32.totalorder %s90, %s93
      %p99 = scmp.eq.s32.totalorder %s16, 0
      %p100 = por %p98, %p99
      %p101 = scmp.ne.s32.totalorder %s90, %s93
      %p102 = scmp.eq.s32.totalorder %s21, 1
      %p103 = por %p101, %p102
      %p104 = scmp.ne.s32.totalorder %s93, %s94
      %p105 = scmp.eq.s32.totalorder %s21, 0
      %p106 = por %p104, %p105
      %p107 = scmp.ne.s32.totalorder %s93, %s94
      %p108 = scmp.eq.s32.totalorder %s22, 1
      %p109 = por %p107, %p108
      %p111 = scmp.ne.s32.totalorder %s94, %s110
      %p112 = scmp.eq.s32.totalorder %s22, 0
      %p113 = por %p111, %p112
      %s114 = ssub.s32 %s23, %s35
      %s115 = ssub.s32 %s24, %s31
      %s116 = sor.u32 %s114, %s115
      %p117 = scmp.eq.s32.totalorder %s116, 0
      %s119 = sadd.s32 %s118, 1
      %s120 = scalar_select %p117, %s118, %s119
      %p123 = pneg %p117
      %p124 = scmp.eq.s32.totalorder %s16, 1
      %p125 = por %p123, %p124
      %p126 = scmp.ne.s32.totalorder %s118, %s121
      %p127 = scmp.eq.s32.totalorder %s16, 0
      %p128 = por %p126, %p127
      %p129 = scmp.ne.s32.totalorder %s118, %s121
      %p130 = scmp.eq.s32.totalorder %s21, 1
      %p131 = por %p129, %p130
      %p132 = scmp.ne.s32.totalorder %s121, %s122
      %p133 = scmp.eq.s32.totalorder %s21, 0
      %p134 = por %p132, %p133
      %p135 = scmp.ne.s32.totalorder %s121, %s122
      %p136 = scmp.eq.s32.totalorder %s22, 1
      %p137 = por %p135, %p136
      %p139 = scmp.ne.s32.totalorder %s122, %s138
      %p140 = scmp.eq.s32.totalorder %s22, 0
      %p141 = por %p139, %p140
      %p142 = scmp.le.s32.totalorder 1, %s16
      %p143 = scmp.lt.s32.totalorder %s16, 3
      %p144 = pnand %p142, %p143
      %p145 = pneg %p144
      // Predicated region
      $region9: #{gemm_relu_div.1} parent=5 // pred_check
        _
      $region10: #{gemm_relu_div.1} parent=5 // pred_check_branch
        %147 = sbr.rel (%p144) target = $region12
      $region11: #{gemm_relu_div.1} parent=5 // pred_region
        %s148 = ssub.s32 %s16, 1
        // Predicated region
        $region13: #{gemm_relu_div.1} parent=11 // pred_check
          %p149 = pneg %p54
        $region14: #{gemm_relu_div.1} parent=11 // pred_check_branch
          %151 = sbr.rel (%p149) target = $region16
        $region15: #{gemm_relu_div.1} parent=11 // pred_region
          %s153 = ssub.s32 1024, 1024
          %154 = vsyncadd [#allocation3], %s153
          %s155 = smul.addr %s25, 8
          %s156 = smul.addr %s155, 128
          %s157 = scalar_lea.hbm %s0, %s156
          %s159 = sshll.u32 [#allocation2], 4
          %s160 = int_to_ptr.vmem [resolvable:$true] %s159
          %162 = dma.hbm_to_vmem [thread:$0]  %s157, 1024, %s160, [#allocation3]
        $region16: #{gemm_relu_div.1} parent=11 // pred_fallthru
          _
      $region12: #{gemm_relu_div.1} parent=5 // pred_fallthru
        _
      %p163 = scmp.lt.s32.totalorder %s16, 2
      // Predicated region
      $region17: #{gemm_relu_div.1} parent=5 // pred_check
        %p164 = pneg %p163
      $region18: #{gemm_relu_div.1} parent=5 // pred_check_branch
        %166 = sbr.rel (%p164) target = $region20
      $region19: #{gemm_relu_div.1} parent=5 // pred_region
        // Predicated region
        $region21: #{gemm_relu_div.1} parent=19 // pred_check
          %p167 = pneg %p74
        $region22: #{gemm_relu_div.1} parent=19 // pred_check_branch
          %169 = sbr.rel (%p167) target = $region24
        $region23: #{gemm_relu_div.1} parent=19 // pred_region
          %s170 = sand.u32 %s16, 1
          %s171 = scalar_lea.sflag [#allocation6], %s170
          %s172 = sand.u32 %s64, 1
          %s173 = smul.addr %s172, 2048
          %s174 = scalar_lea.vmem [#allocation5], %s173
          %s175 = smul.u32 32, %s24
          %s177 = ssub.s32 32768, 32768
          %178 = vsyncadd %s171, %s177
          %s179 = smul.addr %s175, 8
          %s180 = smul.addr %s179, 128
          %s181 = scalar_lea.hbm %s1, %s180
          %s182 = sshll.u32 %s174, 4
          %s183 = int_to_ptr.vmem [resolvable:$true] %s182
          %188 = dma.hbm_to_vmem [thread:$0]  %s181, 32768, %s183, %s171, 1024, 1024, 64
        $region24: #{gemm_relu_div.1} parent=19 // pred_fallthru
          _
        // Predicated region
        $region25: #{gemm_relu_div.1} parent=19 // pred_check
          %p189 = pneg %p100
        $region26: #{gemm_relu_div.1} parent=19 // pred_check_branch
          %191 = sbr.rel (%p189) target = $region28
        $region27: #{gemm_relu_div.1} parent=19 // pred_region
          %s192 = sand.u32 %s16, 1
          %s193 = scalar_lea.sflag [#allocation6], %s192
          %s194 = sand.u32 %s90, 1
          %s195 = smul.addr %s194, 2
          %s196 = scalar_lea.vmem [#allocation7], %s195
          %s197 = smul.u32 2, %s24
          %s199 = ssub.s32 32, 32
          %200 = vsyncadd %s193, %s199
          %s201 = smul.addr %s197, 16
          %s202 = scalar_lea.hbm %s2, %s201
          %s204 = sshll.u32 %s196, 4
          %s205 = int_to_ptr.vmem [resolvable:$true] %s204
          %207 = dma.hbm_to_vmem [thread:$0]  %s202, 32, %s205, %s193
        $region28: #{gemm_relu_div.1} parent=19 // pred_fallthru
          _
      $region20: #{gemm_relu_div.1} parent=5 // pred_fallthru
        _
      %p208 = scmp.le.s32.totalorder 1, %s16
      %p209 = scmp.lt.s32.totalorder %s16, 3
      %p210 = pnand %p208, %p209
      %p211 = pneg %p210
      // Predicated region
      $region29: #{gemm_relu_div.1} parent=5 // pred_check
        _
      $region30: #{gemm_relu_div.1} parent=5 // pred_check_branch
        %213 = sbr.rel (%p210) target = $region32
      $region31: #{gemm_relu_div.1} parent=5 // pred_region
        %s214 = ssub.s32 %s16, 1
        // Predicated region
        $region33: #{gemm_relu_div.1} parent=31 // pred_check
          %p215 = pneg %p54
        $region34: #{gemm_relu_div.1} parent=31 // pred_check_branch
          %217 = sbr.rel (%p215) target = $region36
        $region35: #{gemm_relu_div.1} parent=31 // pred_region
          %218 = dma.done [#allocation3], 1024
        $region36: #{gemm_relu_div.1} parent=31 // pred_fallthru
          _
        %s219 = sand.u32 %s21, 1
        %s220 = scalar_lea.sflag [#allocation6], %s219
        %s221 = sand.u32 %s67, 1
        %s222 = smul.addr %s221, 2048
        %s223 = scalar_lea.vmem [#allocation5], %s222
        // Predicated region
        $region37: #{gemm_relu_div.1} parent=31 // pred_check
          %p224 = pneg %p80
        $region38: #{gemm_relu_div.1} parent=31 // pred_check_branch
          %226 = sbr.rel (%p224) target = $region40
        $region39: #{gemm_relu_div.1} parent=31 // pred_region
          %227 = dma.done %s220, 32768
        $region40: #{gemm_relu_div.1} parent=31 // pred_fallthru
          _
        %s228 = sand.u32 %s21, 1
        %s229 = scalar_lea.sflag [#allocation6], %s228
        %s230 = sand.u32 %s93, 1
        %s231 = smul.addr %s230, 2
        %s232 = scalar_lea.vmem [#allocation7], %s231
        // Predicated region
        $region41: #{gemm_relu_div.1} parent=31 // pred_check
          %p233 = pneg %p106
        $region42: #{gemm_relu_div.1} parent=31 // pred_check_branch
          %235 = sbr.rel (%p233) target = $region44
        $region43: #{gemm_relu_div.1} parent=31 // pred_region
          %236 = dma.done %s229, 32
        $region44: #{gemm_relu_div.1} parent=31 // pred_fallthru
          _
        %p237 = pneg %p54
        %p238 = pneg %p51
        %s239 = sand.u32 %s21, 1
        %s240 = scalar_lea.sflag [#allocation6], %s239
        %s241 = sand.u32 %s67, 1
        %s242 = smul.addr %s241, 2048
        %s243 = scalar_lea.vmem [#allocation5], %s242
        %p244 = pneg %p80
        %p245 = pneg %p77
        %s246 = sand.u32 %s21, 1
        %s247 = scalar_lea.sflag [#allocation6], %s246
        %s248 = sand.u32 %s93, 1
        %s249 = smul.addr %s248, 2
        %s250 = scalar_lea.vmem [#allocation7], %s249
        %p251 = pneg %p106
        %p252 = pneg %p103
        %p253 = pneg %p134
        %p254 = pneg %p131
        %s255 = sand.u32 %s121, 1
        %s256 = scalar_lea.sflag [#allocation4], %s255
        %s257 = sand.u32 %s121, 1
        %s258 = smul.addr %s257, 16
        %s259 = scalar_lea.vmem [#allocation8], %s258
        %s260 = smul.u32 32, %s26
        %s261 = smul.u32 2, %s26
        %s262 = smul.u32 2, %s26
        %v263 = vld [vmem:[#allocation2] sm:$0xff]
        %v264 = vld [vmem:[#allocation2 + $0x8] sm:$0xff]
        %v265 = vld [vmem:[#allocation2 + $0x10] sm:$0xff]
        %v266 = vld [vmem:[#allocation2 + $0x18] sm:$0xff]
        %v267 = vld [vmem:[#allocation2 + $0x20] sm:$0xff]
        %v268 = vld [vmem:[#allocation2 + $0x28] sm:$0xff]
        %v269 = vld [vmem:[#allocation2 + $0x30] sm:$0xff]
        %v270 = vld [vmem:[#allocation2 + $0x38] sm:$0xff]
        %v271 = vld [vmem:[%s223] sm:$0xff]
        %v272 = vld [vmem:[%s223 + $0x8] sm:$0xff]
        %v273 = vld [vmem:[%s223 + $0x10] sm:$0xff]
        %v274 = vld [vmem:[%s223 + $0x18] sm:$0xff]
        %v275 = vld [vmem:[%s223 + $0x20] sm:$0xff]
        %v276 = vld [vmem:[%s223 + $0x28] sm:$0xff]
        %v277 = vld [vmem:[%s223 + $0x30] sm:$0xff]
        %v278 = vld [vmem:[%s223 + $0x38] sm:$0xff]
        %v279 = vld [vmem:[%s223 + $0x40] sm:$0xff]
        %v280 = vld [vmem:[%s223 + $0x48] sm:$0xff]
        %v281 = vld [vmem:[%s223 + $0x50] sm:$0xff]
        %v282 = vld [vmem:[%s223 + $0x58] sm:$0xff]
        %v283 = vld [vmem:[%s223 + $0x60] sm:$0xff]
        %v284 = vld [vmem:[%s223 + $0x68] sm:$0xff]
        %v285 = vld [vmem:[%s223 + $0x70] sm:$0xff]
        %v286 = vld [vmem:[%s223 + $0x78] sm:$0xff]
        %v287 = vld [vmem:[%s223 + $0x80] sm:$0xff]
        %v288 = vld [vmem:[%s223 + $0x88] sm:$0xff]
        %v289 = vld [vmem:[%s223 + $0x90] sm:$0xff]
        %v290 = vld [vmem:[%s223 + $0x98] sm:$0xff]
        %v291 = vld [vmem:[%s223 + $0xa0] sm:$0xff]
        %v292 = vld [vmem:[%s223 + $0xa8] sm:$0xff]
        %v293 = vld [vmem:[%s223 + $0xb0] sm:$0xff]
        %v294 = vld [vmem:[%s223 + $0xb8] sm:$0xff]
        %v295 = vld [vmem:[%s223 + $0xc0] sm:$0xff]
        %v296 = vld [vmem:[%s223 + $0xc8] sm:$0xff]
        %v297 = vld [vmem:[%s223 + $0xd0] sm:$0xff]
        %v298 = vld [vmem:[%s223 + $0xd8] sm:$0xff]
        %v299 = vld [vmem:[%s223 + $0xe0] sm:$0xff]
        %v300 = vld [vmem:[%s223 + $0xe8] sm:$0xff]
        %v301 = vld [vmem:[%s223 + $0xf0] sm:$0xff]
        %v302 = vld [vmem:[%s223 + $0xf8] sm:$0xff]
        %v303 = vld [vmem:[%s223 + $0x100] sm:$0xff]
        %v304 = vld [vmem:[%s223 + $0x108] sm:$0xff]
        %v305 = vld [vmem:[%s223 + $0x110] sm:$0xff]
        %v306 = vld [vmem:[%s223 + $0x118] sm:$0xff]
        %v307 = vld [vmem:[%s223 + $0x120] sm:$0xff]
        %v308 = vld [vmem:[%s223 + $0x128] sm:$0xff]
        %v309 = vld [vmem:[%s223 + $0x130] sm:$0xff]
        %v310 = vld [vmem:[%s223 + $0x138] sm:$0xff]
        %v311 = vld [vmem:[%s223 + $0x140] sm:$0xff]
        %v312 = vld [vmem:[%s223 + $0x148] sm:$0xff]
        %v313 = vld [vmem:[%s223 + $0x150] sm:$0xff]
        %v314 = vld [vmem:[%s223 + $0x158] sm:$0xff]
        %v315 = vld [vmem:[%s223 + $0x160] sm:$0xff]
        %v316 = vld [vmem:[%s223 + $0x168] sm:$0xff]
        %v317 = vld [vmem:[%s223 + $0x170] sm:$0xff]
        %v318 = vld [vmem:[%s223 + $0x178] sm:$0xff]
        %v319 = vld [vmem:[%s223 + $0x180] sm:$0xff]
        %v320 = vld [vmem:[%s223 + $0x188] sm:$0xff]
        %v321 = vld [vmem:[%s223 + $0x190] sm:$0xff]
        %v322 = vld [vmem:[%s223 + $0x198] sm:$0xff]
        %v323 = vld [vmem:[%s223 + $0x1a0] sm:$0xff]
        %v324 = vld [vmem:[%s223 + $0x1a8] sm:$0xff]
        %v325 = vld [vmem:[%s223 + $0x1b0] sm:$0xff]
        %v326 = vld [vmem:[%s223 + $0x1b8] sm:$0xff]
        %v327 = vld [vmem:[%s223 + $0x1c0] sm:$0xff]
        %v328 = vld [vmem:[%s223 + $0x1c8] sm:$0xff]
        %v329 = vld [vmem:[%s223 + $0x1d0] sm:$0xff]
        %v330 = vld [vmem:[%s223 + $0x1d8] sm:$0xff]
        %v331 = vld [vmem:[%s223 + $0x1e0] sm:$0xff]
        %v332 = vld [vmem:[%s223 + $0x1e8] sm:$0xff]
        %v333 = vld [vmem:[%s223 + $0x1f0] sm:$0xff]
        %v334 = vld [vmem:[%s223 + $0x1f8] sm:$0xff]
        %v335 = vld [vmem:[%s223 + $0x200] sm:$0xff]
        %v336 = vld [vmem:[%s223 + $0x208] sm:$0xff]
        %v337 = vld [vmem:[%s223 + $0x210] sm:$0xff]
        %v338 = vld [vmem:[%s223 + $0x218] sm:$0xff]
        %v339 = vld [vmem:[%s223 + $0x220] sm:$0xff]
        %v340 = vld [vmem:[%s223 + $0x228] sm:$0xff]
        %v341 = vld [vmem:[%s223 + $0x230] sm:$0xff]
        %v342 = vld [vmem:[%s223 + $0x238] sm:$0xff]
        %v343 = vld [vmem:[%s223 + $0x240] sm:$0xff]
        %v344 = vld [vmem:[%s223 + $0x248] sm:$0xff]
        %v345 = vld [vmem:[%s223 + $0x250] sm:$0xff]
        %v346 = vld [vmem:[%s223 + $0x258] sm:$0xff]
        %v347 = vld [vmem:[%s223 + $0x260] sm:$0xff]
        %v348 = vld [vmem:[%s223 + $0x268] sm:$0xff]
        %v349 = vld [vmem:[%s223 + $0x270] sm:$0xff]
        %v350 = vld [vmem:[%s223 + $0x278] sm:$0xff]
        %v351 = vld [vmem:[%s223 + $0x280] sm:$0xff]
        %v352 = vld [vmem:[%s223 + $0x288] sm:$0xff]
        %v353 = vld [vmem:[%s223 + $0x290] sm:$0xff]
        %v354 = vld [vmem:[%s223 + $0x298] sm:$0xff]
        %v355 = vld [vmem:[%s223 + $0x2a0] sm:$0xff]
        %v356 = vld [vmem:[%s223 + $0x2a8] sm:$0xff]
        %v357 = vld [vmem:[%s223 + $0x2b0] sm:$0xff]
        %v358 = vld [vmem:[%s223 + $0x2b8] sm:$0xff]
        %v359 = vld [vmem:[%s223 + $0x2c0] sm:$0xff]
        %v360 = vld [vmem:[%s223 + $0x2c8] sm:$0xff]
        %v361 = vld [vmem:[%s223 + $0x2d0] sm:$0xff]
        %v362 = vld [vmem:[%s223 + $0x2d8] sm:$0xff]
        %v363 = vld [vmem:[%s223 + $0x2e0] sm:$0xff]
        %v364 = vld [vmem:[%s223 + $0x2e8] sm:$0xff]
        %v365 = vld [vmem:[%s223 + $0x2f0] sm:$0xff]
        %v366 = vld [vmem:[%s223 + $0x2f8] sm:$0xff]
        %v367 = vld [vmem:[%s223 + $0x300] sm:$0xff]
        %v368 = vld [vmem:[%s223 + $0x308] sm:$0xff]
        %v369 = vld [vmem:[%s223 + $0x310] sm:$0xff]
        %v370 = vld [vmem:[%s223 + $0x318] sm:$0xff]
        %v371 = vld [vmem:[%s223 + $0x320] sm:$0xff]
        %v372 = vld [vmem:[%s223 + $0x328] sm:$0xff]
        %v373 = vld [vmem:[%s223 + $0x330] sm:$0xff]
        %v374 = vld [vmem:[%s223 + $0x338] sm:$0xff]
        %v375 = vld [vmem:[%s223 + $0x340] sm:$0xff]
        %v376 = vld [vmem:[%s223 + $0x348] sm:$0xff]
        %v377 = vld [vmem:[%s223 + $0x350] sm:$0xff]
        %v378 = vld [vmem:[%s223 + $0x358] sm:$0xff]
        %v379 = vld [vmem:[%s223 + $0x360] sm:$0xff]
        %v380 = vld [vmem:[%s223 + $0x368] sm:$0xff]
        %v381 = vld [vmem:[%s223 + $0x370] sm:$0xff]
        %v382 = vld [vmem:[%s223 + $0x378] sm:$0xff]
        %v383 = vld [vmem:[%s223 + $0x380] sm:$0xff]
        %v384 = vld [vmem:[%s223 + $0x388] sm:$0xff]
        %v385 = vld [vmem:[%s223 + $0x390] sm:$0xff]
        %v386 = vld [vmem:[%s223 + $0x398] sm:$0xff]
        %v387 = vld [vmem:[%s223 + $0x3a0] sm:$0xff]
        %v388 = vld [vmem:[%s223 + $0x3a8] sm:$0xff]
        %v389 = vld [vmem:[%s223 + $0x3b0] sm:$0xff]
        %v390 = vld [vmem:[%s223 + $0x3b8] sm:$0xff]
        %v391 = vld [vmem:[%s223 + $0x3c0] sm:$0xff]
        %v392 = vld [vmem:[%s223 + $0x3c8] sm:$0xff]
        %v393 = vld [vmem:[%s223 + $0x3d0] sm:$0xff]
        %v394 = vld [vmem:[%s223 + $0x3d8] sm:$0xff]
        %v395 = vld [vmem:[%s223 + $0x3e0] sm:$0xff]
        %v396 = vld [vmem:[%s223 + $0x3e8] sm:$0xff]
        %v397 = vld [vmem:[%s223 + $0x3f0] sm:$0xff]
        %v398 = vld [vmem:[%s223 + $0x3f8] sm:$0xff]
        %v399 = vld [vmem:[%s223 + $0x400] sm:$0xff]
        %v400 = vld [vmem:[%s223 + $0x408] sm:$0xff]
        %v401 = vld [vmem:[%s223 + $0x410] sm:$0xff]
        %v402 = vld [vmem:[%s223 + $0x418] sm:$0xff]
        %v403 = vld [vmem:[%s223 + $0x420] sm:$0xff]
        %v404 = vld [vmem:[%s223 + $0x428] sm:$0xff]
        %v405 = vld [vmem:[%s223 + $0x430] sm:$0xff]
        %v406 = vld [vmem:[%s223 + $0x438] sm:$0xff]
        %v407 = vld [vmem:[%s223 + $0x440] sm:$0xff]
        %v408 = vld [vmem:[%s223 + $0x448] sm:$0xff]
        %v409 = vld [vmem:[%s223 + $0x450] sm:$0xff]
        %v410 = vld [vmem:[%s223 + $0x458] sm:$0xff]
        %v411 = vld [vmem:[%s223 + $0x460] sm:$0xff]
        %v412 = vld [vmem:[%s223 + $0x468] sm:$0xff]
        %v413 = vld [vmem:[%s223 + $0x470] sm:$0xff]
        %v414 = vld [vmem:[%s223 + $0x478] sm:$0xff]
        %v415 = vld [vmem:[%s223 + $0x480] sm:$0xff]
        %v416 = vld [vmem:[%s223 + $0x488] sm:$0xff]
        %v417 = vld [vmem:[%s223 + $0x490] sm:$0xff]
        %v418 = vld [vmem:[%s223 + $0x498] sm:$0xff]
        %v419 = vld [vmem:[%s223 + $0x4a0] sm:$0xff]
        %v420 = vld [vmem:[%s223 + $0x4a8] sm:$0xff]
        %v421 = vld [vmem:[%s223 + $0x4b0] sm:$0xff]
        %v422 = vld [vmem:[%s223 + $0x4b8] sm:$0xff]
        %v423 = vld [vmem:[%s223 + $0x4c0] sm:$0xff]
        %v424 = vld [vmem:[%s223 + $0x4c8] sm:$0xff]
        %v425 = vld [vmem:[%s223 + $0x4d0] sm:$0xff]
        %v426 = vld [vmem:[%s223 + $0x4d8] sm:$0xff]
        %v427 = vld [vmem:[%s223 + $0x4e0] sm:$0xff]
        %v428 = vld [vmem:[%s223 + $0x4e8] sm:$0xff]
        %v429 = vld [vmem:[%s223 + $0x4f0] sm:$0xff]
        %v430 = vld [vmem:[%s223 + $0x4f8] sm:$0xff]
        %v431 = vld [vmem:[%s223 + $0x500] sm:$0xff]
        %v432 = vld [vmem:[%s223 + $0x508] sm:$0xff]
        %v433 = vld [vmem:[%s223 + $0x510] sm:$0xff]
        %v434 = vld [vmem:[%s223 + $0x518] sm:$0xff]
        %v435 = vld [vmem:[%s223 + $0x520] sm:$0xff]
        %v436 = vld [vmem:[%s223 + $0x528] sm:$0xff]
        %v437 = vld [vmem:[%s223 + $0x530] sm:$0xff]
        %v438 = vld [vmem:[%s223 + $0x538] sm:$0xff]
        %v439 = vld [vmem:[%s223 + $0x540] sm:$0xff]
        %v440 = vld [vmem:[%s223 + $0x548] sm:$0xff]
        %v441 = vld [vmem:[%s223 + $0x550] sm:$0xff]
        %v442 = vld [vmem:[%s223 + $0x558] sm:$0xff]
        %v443 = vld [vmem:[%s223 + $0x560] sm:$0xff]
        %v444 = vld [vmem:[%s223 + $0x568] sm:$0xff]
        %v445 = vld [vmem:[%s223 + $0x570] sm:$0xff]
        %v446 = vld [vmem:[%s223 + $0x578] sm:$0xff]
        %v447 = vld [vmem:[%s223 + $0x580] sm:$0xff]
        %v448 = vld [vmem:[%s223 + $0x588] sm:$0xff]
        %v449 = vld [vmem:[%s223 + $0x590] sm:$0xff]
        %v450 = vld [vmem:[%s223 + $0x598] sm:$0xff]
        %v451 = vld [vmem:[%s223 + $0x5a0] sm:$0xff]
        %v452 = vld [vmem:[%s223 + $0x5a8] sm:$0xff]
        %v453 = vld [vmem:[%s223 + $0x5b0] sm:$0xff]
        %v454 = vld [vmem:[%s223 + $0x5b8] sm:$0xff]
        %v455 = vld [vmem:[%s223 + $0x5c0] sm:$0xff]
        %v456 = vld [vmem:[%s223 + $0x5c8] sm:$0xff]
        %v457 = vld [vmem:[%s223 + $0x5d0] sm:$0xff]
        %v458 = vld [vmem:[%s223 + $0x5d8] sm:$0xff]
        %v459 = vld [vmem:[%s223 + $0x5e0] sm:$0xff]
        %v460 = vld [vmem:[%s223 + $0x5e8] sm:$0xff]
        %v461 = vld [vmem:[%s223 + $0x5f0] sm:$0xff]
        %v462 = vld [vmem:[%s223 + $0x5f8] sm:$0xff]
        %v463 = vld [vmem:[%s223 + $0x600] sm:$0xff]
        %v464 = vld [vmem:[%s223 + $0x608] sm:$0xff]
        %v465 = vld [vmem:[%s223 + $0x610] sm:$0xff]
        %v466 = vld [vmem:[%s223 + $0x618] sm:$0xff]
        %v467 = vld [vmem:[%s223 + $0x620] sm:$0xff]
        %v468 = vld [vmem:[%s223 + $0x628] sm:$0xff]
        %v469 = vld [vmem:[%s223 + $0x630] sm:$0xff]
        %v470 = vld [vmem:[%s223 + $0x638] sm:$0xff]
        %v471 = vld [vmem:[%s223 + $0x640] sm:$0xff]
        %v472 = vld [vmem:[%s223 + $0x648] sm:$0xff]
        %v473 = vld [vmem:[%s223 + $0x650] sm:$0xff]
        %v474 = vld [vmem:[%s223 + $0x658] sm:$0xff]
        %v475 = vld [vmem:[%s223 + $0x660] sm:$0xff]
        %v476 = vld [vmem:[%s223 + $0x668] sm:$0xff]
        %v477 = vld [vmem:[%s223 + $0x670] sm:$0xff]
        %v478 = vld [vmem:[%s223 + $0x678] sm:$0xff]
        %v479 = vld [vmem:[%s223 + $0x680] sm:$0xff]
        %v480 = vld [vmem:[%s223 + $0x688] sm:$0xff]
        %v481 = vld [vmem:[%s223 + $0x690] sm:$0xff]
        %v482 = vld [vmem:[%s223 + $0x698] sm:$0xff]
        %v483 = vld [vmem:[%s223 + $0x6a0] sm:$0xff]
        %v484 = vld [vmem:[%s223 + $0x6a8] sm:$0xff]
        %v485 = vld [vmem:[%s223 + $0x6b0] sm:$0xff]
        %v486 = vld [vmem:[%s223 + $0x6b8] sm:$0xff]
        %v487 = vld [vmem:[%s223 + $0x6c0] sm:$0xff]
        %v488 = vld [vmem:[%s223 + $0x6c8] sm:$0xff]
        %v489 = vld [vmem:[%s223 + $0x6d0] sm:$0xff]
        %v490 = vld [vmem:[%s223 + $0x6d8] sm:$0xff]
        %v491 = vld [vmem:[%s223 + $0x6e0] sm:$0xff]
        %v492 = vld [vmem:[%s223 + $0x6e8] sm:$0xff]
        %v493 = vld [vmem:[%s223 + $0x6f0] sm:$0xff]
        %v494 = vld [vmem:[%s223 + $0x6f8] sm:$0xff]
        %v495 = vld [vmem:[%s223 + $0x700] sm:$0xff]
        %v496 = vld [vmem:[%s223 + $0x708] sm:$0xff]
        %v497 = vld [vmem:[%s223 + $0x710] sm:$0xff]
        %v498 = vld [vmem:[%s223 + $0x718] sm:$0xff]
        %v499 = vld [vmem:[%s223 + $0x720] sm:$0xff]
        %v500 = vld [vmem:[%s223 + $0x728] sm:$0xff]
        %v501 = vld [vmem:[%s223 + $0x730] sm:$0xff]
        %v502 = vld [vmem:[%s223 + $0x738] sm:$0xff]
        %v503 = vld [vmem:[%s223 + $0x740] sm:$0xff]
        %v504 = vld [vmem:[%s223 + $0x748] sm:$0xff]
        %v505 = vld [vmem:[%s223 + $0x750] sm:$0xff]
        %v506 = vld [vmem:[%s223 + $0x758] sm:$0xff]
        %v507 = vld [vmem:[%s223 + $0x760] sm:$0xff]
        %v508 = vld [vmem:[%s223 + $0x768] sm:$0xff]
        %v509 = vld [vmem:[%s223 + $0x770] sm:$0xff]
        %v510 = vld [vmem:[%s223 + $0x778] sm:$0xff]
        %v511 = vld [vmem:[%s223 + $0x780] sm:$0xff]
        %v512 = vld [vmem:[%s223 + $0x788] sm:$0xff]
        %v513 = vld [vmem:[%s223 + $0x790] sm:$0xff]
        %v514 = vld [vmem:[%s223 + $0x798] sm:$0xff]
        %v515 = vld [vmem:[%s223 + $0x7a0] sm:$0xff]
        %v516 = vld [vmem:[%s223 + $0x7a8] sm:$0xff]
        %v517 = vld [vmem:[%s223 + $0x7b0] sm:$0xff]
        %v518 = vld [vmem:[%s223 + $0x7b8] sm:$0xff]
        %v519 = vld [vmem:[%s223 + $0x7c0] sm:$0xff]
        %v520 = vld [vmem:[%s223 + $0x7c8] sm:$0xff]
        %v521 = vld [vmem:[%s223 + $0x7d0] sm:$0xff]
        %v522 = vld [vmem:[%s223 + $0x7d8] sm:$0xff]
        %v523 = vld [vmem:[%s223 + $0x7e0] sm:$0xff]
        %v524 = vld [vmem:[%s223 + $0x7e8] sm:$0xff]
        %v525 = vld [vmem:[%s223 + $0x7f0] sm:$0xff]
        %v526 = vld [vmem:[%s223 + $0x7f8] sm:$0xff]
        %v527 = vld [vmem:[%s232] sm:$0x3]
        %v529 = vlaneseq
        %v530 = vshrl.u32 %v529, 7
        %v531 = vsub.s32 0, %v530
        %v532 = vrot.slane %v527, %v531
        %v533 = vlaneseq
        %v534 = vshrl.u32 %v533, 7
        %v535 = vsub.s32 1, %v534
        %v536 = vrot.slane %v527, %v535
        %539 = vmatprep.subr.mxu0 %v272
        %540 = vmatpush1.xpose.msra.mxu0 %v271
        %541 = vmatprep.subr.mxu0 %v280
        %542 = vmatpush1.xpose.msra.mxu0 %v279
        %543 = vmatprep.subr.mxu0 %v288
        %544 = vmatpush1.xpose.msra.mxu0 %v287
        %545 = vmatprep.subr.mxu0 %v296
        %546 = vmatpush1.xpose.msra.mxu0 %v295
        %547 = vmatprep.subr.mxu0 %v304
        %548 = vmatpush1.xpose.msra.mxu0 %v303
        %549 = vmatprep.subr.mxu0 %v312
        %550 = vmatpush1.xpose.msra.mxu0 %v311
        %551 = vmatprep.subr.mxu0 %v320
        %552 = vmatpush1.xpose.msra.mxu0 %v319
        %553 = vmatprep.subr.mxu0 %v328
        %554 = vmatpush1.xpose.msra.mxu0 %v327
        %555 = vmatprep.subr.mxu0 %v336
        %556 = vmatpush1.xpose.msra.mxu0 %v335
        %557 = vmatprep.subr.mxu0 %v344
        %558 = vmatpush1.xpose.msra.mxu0 %v343
        %559 = vmatprep.subr.mxu0 %v352
        %560 = vmatpush1.xpose.msra.mxu0 %v351
        %561 = vmatprep.subr.mxu0 %v360
        %562 = vmatpush1.xpose.msra.mxu0 %v359
        %563 = vmatprep.subr.mxu0 %v368
        %564 = vmatpush1.xpose.msra.mxu0 %v367
        %565 = vmatprep.subr.mxu0 %v376
        %566 = vmatpush1.xpose.msra.mxu0 %v375
        %567 = vmatprep.subr.mxu0 %v384
        %568 = vmatpush1.xpose.msra.mxu0 %v383
        %569 = vmatprep.subr.mxu0 %v392
        %570 = vmatpush1.xpose.msra.mxu0 %v391
        %571 = vmatprep.subr.mxu0 %v400
        %572 = vmatpush1.xpose.msra.mxu0 %v399
        %573 = vmatprep.subr.mxu0 %v408
        %574 = vmatpush1.xpose.msra.mxu0 %v407
        %575 = vmatprep.subr.mxu0 %v416
        %576 = vmatpush1.xpose.msra.mxu0 %v415
        %577 = vmatprep.subr.mxu0 %v424
        %578 = vmatpush1.xpose.msra.mxu0 %v423
        %579 = vmatprep.subr.mxu0 %v432
        %580 = vmatpush1.xpose.msra.mxu0 %v431
        %581 = vmatprep.subr.mxu0 %v440
        %582 = vmatpush1.xpose.msra.mxu0 %v439
        %583 = vmatprep.subr.mxu0 %v448
        %584 = vmatpush1.xpose.msra.mxu0 %v447
        %585 = vmatprep.subr.mxu0 %v456
        %586 = vmatpush1.xpose.msra.mxu0 %v455
        %587 = vmatprep.subr.mxu0 %v464
        %588 = vmatpush1.xpose.msra.mxu0 %v463
        %589 = vmatprep.subr.mxu0 %v472
        %590 = vmatpush1.xpose.msra.mxu0 %v471
        %591 = vmatprep.subr.mxu0 %v480
        %592 = vmatpush1.xpose.msra.mxu0 %v479
        %593 = vmatprep.subr.mxu0 %v488
        %594 = vmatpush1.xpose.msra.mxu0 %v487
        %595 = vmatprep.subr.mxu0 %v496
        %596 = vmatpush1.xpose.msra.mxu0 %v495
        %597 = vmatprep.subr.mxu0 %v504
        %598 = vmatpush1.xpose.msra.mxu0 %v503
        %599 = vmatprep.subr.mxu0 %v512
        %600 = vmatpush1.xpose.msra.mxu0 %v511
        %601 = vmatprep.subr.mxu0 %v520
        %602 = vmatpush1.xpose.msra.mxu0 %v519
        %603 = vmatprep.mubr.f32.mxu0 %v264
        %604 = vmatmul.mubr.f32.gmra.mrb[0].mxu0 %v263
        %v605 = vpop.f32.mrb[0].mxu0
        %v606 = vadd.f32 %v532, %v605
        %v607 = vpop.f32.mrb[0].mxu0
        %v608 = vadd.f32 %v536, %v607
        %609 = vdwg.mxu0
        %610 = vmatprep.subr.mxu0 %v274
        %611 = vmatpush1.xpose.msra.mxu0 %v273
        %612 = vmatprep.subr.mxu0 %v282
        %613 = vmatpush1.xpose.msra.mxu0 %v281
        %614 = vmatprep.subr.mxu0 %v290
        %615 = vmatpush1.xpose.msra.mxu0 %v289
        %616 = vmatprep.subr.mxu0 %v298
        %617 = vmatpush1.xpose.msra.mxu0 %v297
        %618 = vmatprep.subr.mxu0 %v306
        %619 = vmatpush1.xpose.msra.mxu0 %v305
        %620 = vmatprep.subr.mxu0 %v314
        %621 = vmatpush1.xpose.msra.mxu0 %v313
        %622 = vmatprep.subr.mxu0 %v322
        %623 = vmatpush1.xpose.msra.mxu0 %v321
        %624 = vmatprep.subr.mxu0 %v330
        %625 = vmatpush1.xpose.msra.mxu0 %v329
        %626 = vmatprep.subr.mxu0 %v338
        %627 = vmatpush1.xpose.msra.mxu0 %v337
        %628 = vmatprep.subr.mxu0 %v346
        %629 = vmatpush1.xpose.msra.mxu0 %v345
        %630 = vmatprep.subr.mxu0 %v354
        %631 = vmatpush1.xpose.msra.mxu0 %v353
        %632 = vmatprep.subr.mxu0 %v362
        %633 = vmatpush1.xpose.msra.mxu0 %v361
        %634 = vmatprep.subr.mxu0 %v370
        %635 = vmatpush1.xpose.msra.mxu0 %v369
        %636 = vmatprep.subr.mxu0 %v378
        %637 = vmatpush1.xpose.msra.mxu0 %v377
        %638 = vmatprep.subr.mxu0 %v386
        %639 = vmatpush1.xpose.msra.mxu0 %v385
        %640 = vmatprep.subr.mxu0 %v394
        %641 = vmatpush1.xpose.msra.mxu0 %v393
        %642 = vmatprep.subr.mxu0 %v402
        %643 = vmatpush1.xpose.msra.mxu0 %v401
        %644 = vmatprep.subr.mxu0 %v410
        %645 = vmatpush1.xpose.msra.mxu0 %v409
        %646 = vmatprep.subr.mxu0 %v418
        %647 = vmatpush1.xpose.msra.mxu0 %v417
        %648 = vmatprep.subr.mxu0 %v426
        %649 = vmatpush1.xpose.msra.mxu0 %v425
        %650 = vmatprep.subr.mxu0 %v434
        %651 = vmatpush1.xpose.msra.mxu0 %v433
        %652 = vmatprep.subr.mxu0 %v442
        %653 = vmatpush1.xpose.msra.mxu0 %v441
        %654 = vmatprep.subr.mxu0 %v450
        %655 = vmatpush1.xpose.msra.mxu0 %v449
        %656 = vmatprep.subr.mxu0 %v458
        %657 = vmatpush1.xpose.msra.mxu0 %v457
        %658 = vmatprep.subr.mxu0 %v466
        %659 = vmatpush1.xpose.msra.mxu0 %v465
        %660 = vmatprep.subr.mxu0 %v474
        %661 = vmatpush1.xpose.msra.mxu0 %v473
        %662 = vmatprep.subr.mxu0 %v482
        %663 = vmatpush1.xpose.msra.mxu0 %v481
        %664 = vmatprep.subr.mxu0 %v490
        %665 = vmatpush1.xpose.msra.mxu0 %v489
        %666 = vmatprep.subr.mxu0 %v498
        %667 = vmatpush1.xpose.msra.mxu0 %v497
        %668 = vmatprep.subr.mxu0 %v506
        %669 = vmatpush1.xpose.msra.mxu0 %v505
        %670 = vmatprep.subr.mxu0 %v514
        %671 = vmatpush1.xpose.msra.mxu0 %v513
        %672 = vmatprep.subr.mxu0 %v522
        %673 = vmatpush1.xpose.msra.mxu0 %v521
        %674 = vmatprep.mubr.f32.mxu0 %v266
        %675 = vmatmul.mubr.f32.gmra.mrb[0].mxu0 %v265
        %v676 = vpop.f32.mrb[0].mxu0
        %v677 = vadd.f32 %v606, %v676
        %v678 = vpop.f32.mrb[0].mxu0
        %v679 = vadd.f32 %v608, %v678
        %680 = vdwg.mxu0
        %681 = vmatprep.subr.mxu0 %v276
        %682 = vmatpush1.xpose.msra.mxu0 %v275
        %683 = vmatprep.subr.mxu0 %v284
        %684 = vmatpush1.xpose.msra.mxu0 %v283
        %685 = vmatprep.subr.mxu0 %v292
        %686 = vmatpush1.xpose.msra.mxu0 %v291
        %687 = vmatprep.subr.mxu0 %v300
        %688 = vmatpush1.xpose.msra.mxu0 %v299
        %689 = vmatprep.subr.mxu0 %v308
        %690 = vmatpush1.xpose.msra.mxu0 %v307
        %691 = vmatprep.subr.mxu0 %v316
        %692 = vmatpush1.xpose.msra.mxu0 %v315
        %693 = vmatprep.subr.mxu0 %v324
        %694 = vmatpush1.xpose.msra.mxu0 %v323
        %695 = vmatprep.subr.mxu0 %v332
        %696 = vmatpush1.xpose.msra.mxu0 %v331
        %697 = vmatprep.subr.mxu0 %v340
        %698 = vmatpush1.xpose.msra.mxu0 %v339
        %699 = vmatprep.subr.mxu0 %v348
        %700 = vmatpush1.xpose.msra.mxu0 %v347
        %701 = vmatprep.subr.mxu0 %v356
        %702 = vmatpush1.xpose.msra.mxu0 %v355
        %703 = vmatprep.subr.mxu0 %v364
        %704 = vmatpush1.xpose.msra.mxu0 %v363
        %705 = vmatprep.subr.mxu0 %v372
        %706 = vmatpush1.xpose.msra.mxu0 %v371
        %707 = vmatprep.subr.mxu0 %v380
        %708 = vmatpush1.xpose.msra.mxu0 %v379
        %709 = vmatprep.subr.mxu0 %v388
        %710 = vmatpush1.xpose.msra.mxu0 %v387
        %711 = vmatprep.subr.mxu0 %v396
        %712 = vmatpush1.xpose.msra.mxu0 %v395
        %713 = vmatprep.subr.mxu0 %v404
        %714 = vmatpush1.xpose.msra.mxu0 %v403
        %715 = vmatprep.subr.mxu0 %v412
        %716 = vmatpush1.xpose.msra.mxu0 %v411
        %717 = vmatprep.subr.mxu0 %v420
        %718 = vmatpush1.xpose.msra.mxu0 %v419
        %719 = vmatprep.subr.mxu0 %v428
        %720 = vmatpush1.xpose.msra.mxu0 %v427
        %721 = vmatprep.subr.mxu0 %v436
        %722 = vmatpush1.xpose.msra.mxu0 %v435
        %723 = vmatprep.subr.mxu0 %v444
        %724 = vmatpush1.xpose.msra.mxu0 %v443
        %725 = vmatprep.subr.mxu0 %v452
        %726 = vmatpush1.xpose.msra.mxu0 %v451
        %727 = vmatprep.subr.mxu0 %v460
        %728 = vmatpush1.xpose.msra.mxu0 %v459
        %729 = vmatprep.subr.mxu0 %v468
        %730 = vmatpush1.xpose.msra.mxu0 %v467
        %731 = vmatprep.subr.mxu0 %v476
        %732 = vmatpush1.xpose.msra.mxu0 %v475
        %733 = vmatprep.subr.mxu0 %v484
        %734 = vmatpush1.xpose.msra.mxu0 %v483
        %735 = vmatprep.subr.mxu0 %v492
        %736 = vmatpush1.xpose.msra.mxu0 %v491
        %737 = vmatprep.subr.mxu0 %v500
        %738 = vmatpush1.xpose.msra.mxu0 %v499
        %739 = vmatprep.subr.mxu0 %v508
        %740 = vmatpush1.xpose.msra.mxu0 %v507
        %741 = vmatprep.subr.mxu0 %v516
        %742 = vmatpush1.xpose.msra.mxu0 %v515
        %743 = vmatprep.subr.mxu0 %v524
        %744 = vmatpush1.xpose.msra.mxu0 %v523
        %745 = vmatprep.mubr.f32.mxu0 %v268
        %746 = vmatmul.mubr.f32.gmra.mrb[0].mxu0 %v267
        %v747 = vpop.f32.mrb[0].mxu0
        %v748 = vadd.f32 %v677, %v747
        %v749 = vpop.f32.mrb[0].mxu0
        %v750 = vadd.f32 %v679, %v749
        %751 = vdwg.mxu0
        %752 = vmatprep.subr.mxu0 %v278
        %753 = vmatpush1.xpose.msra.mxu0 %v277
        %754 = vmatprep.subr.mxu0 %v286
        %755 = vmatpush1.xpose.msra.mxu0 %v285
        %756 = vmatprep.subr.mxu0 %v294
        %757 = vmatpush1.xpose.msra.mxu0 %v293
        %758 = vmatprep.subr.mxu0 %v302
        %759 = vmatpush1.xpose.msra.mxu0 %v301
        %760 = vmatprep.subr.mxu0 %v310
        %761 = vmatpush1.xpose.msra.mxu0 %v309
        %762 = vmatprep.subr.mxu0 %v318
        %763 = vmatpush1.xpose.msra.mxu0 %v317
        %764 = vmatprep.subr.mxu0 %v326
        %765 = vmatpush1.xpose.msra.mxu0 %v325
        %766 = vmatprep.subr.mxu0 %v334
        %767 = vmatpush1.xpose.msra.mxu0 %v333
        %768 = vmatprep.subr.mxu0 %v342
        %769 = vmatpush1.xpose.msra.mxu0 %v341
        %770 = vmatprep.subr.mxu0 %v350
        %771 = vmatpush1.xpose.msra.mxu0 %v349
        %772 = vmatprep.subr.mxu0 %v358
        %773 = vmatpush1.xpose.msra.mxu0 %v357
        %774 = vmatprep.subr.mxu0 %v366
        %775 = vmatpush1.xpose.msra.mxu0 %v365
        %776 = vmatprep.subr.mxu0 %v374
        %777 = vmatpush1.xpose.msra.mxu0 %v373
        %778 = vmatprep.subr.mxu0 %v382
        %779 = vmatpush1.xpose.msra.mxu0 %v381
        %780 = vmatprep.subr.mxu0 %v390
        %781 = vmatpush1.xpose.msra.mxu0 %v389
        %782 = vmatprep.subr.mxu0 %v398
        %783 = vmatpush1.xpose.msra.mxu0 %v397
        %784 = vmatprep.subr.mxu0 %v406
        %785 = vmatpush1.xpose.msra.mxu0 %v405
        %786 = vmatprep.subr.mxu0 %v414
        %787 = vmatpush1.xpose.msra.mxu0 %v413
        %788 = vmatprep.subr.mxu0 %v422
        %789 = vmatpush1.xpose.msra.mxu0 %v421
        %790 = vmatprep.subr.mxu0 %v430
        %791 = vmatpush1.xpose.msra.mxu0 %v429
        %792 = vmatprep.subr.mxu0 %v438
        %793 = vmatpush1.xpose.msra.mxu0 %v437
        %794 = vmatprep.subr.mxu0 %v446
        %795 = vmatpush1.xpose.msra.mxu0 %v445
        %796 = vmatprep.subr.mxu0 %v454
        %797 = vmatpush1.xpose.msra.mxu0 %v453
        %798 = vmatprep.subr.mxu0 %v462
        %799 = vmatpush1.xpose.msra.mxu0 %v461
        %800 = vmatprep.subr.mxu0 %v470
        %801 = vmatpush1.xpose.msra.mxu0 %v469
        %802 = vmatprep.subr.mxu0 %v478
        %803 = vmatpush1.xpose.msra.mxu0 %v477
        %804 = vmatprep.subr.mxu0 %v486
        %805 = vmatpush1.xpose.msra.mxu0 %v485
        %806 = vmatprep.subr.mxu0 %v494
        %807 = vmatpush1.xpose.msra.mxu0 %v493
        %808 = vmatprep.subr.mxu0 %v502
        %809 = vmatpush1.xpose.msra.mxu0 %v501
        %810 = vmatprep.subr.mxu0 %v510
        %811 = vmatpush1.xpose.msra.mxu0 %v509
        %812 = vmatprep.subr.mxu0 %v518
        %813 = vmatpush1.xpose.msra.mxu0 %v517
        %814 = vmatprep.subr.mxu0 %v526
        %815 = vmatpush1.xpose.msra.mxu0 %v525
        %816 = vmatprep.mubr.f32.mxu0 %v270
        %817 = vmatmul.mubr.f32.gmra.mrb[0].mxu0 %v269
        %v818 = vpop.f32.mrb[0].mxu0
        %v819 = vadd.f32 %v748, %v818
        %v820 = vpop.f32.mrb[0].mxu0
        %v821 = vadd.f32 %v750, %v820
        %822 = vdwg.mxu0
        %v823 = vmax.f32 %v819, 0.0
        %v824 = vmax.f32 %v821, 0.0
        %v825 = vmul.f32 %v823, 0.5
        %v826 = vmul.f32 %v824, 0.5
        %827 = vst [vmem:[%s259] sm:$0xff] %v825
        %828 = vst [vmem:[%s259 + $0x8] sm:$0xff] %v826
        %s829 = sand.u32 %s121, 1
        %s830 = scalar_lea.sflag [#allocation4], %s829
        %s831 = sand.u32 %s121, 1
        %s832 = smul.addr %s831, 16
        %s833 = scalar_lea.vmem [#allocation8], %s832
        // Predicated region
        $region45: #{gemm_relu_div.1} parent=31 // pred_check
          %p834 = pneg %p131
        $region46: #{gemm_relu_div.1} parent=31 // pred_check_branch
          %836 = sbr.rel (%p834) target = $region48
        $region47: #{gemm_relu_div.1} parent=31 // pred_region
          %s837 = smul.u32 2, %s26
          %s839 = ssub.s32 256, 256
          %840 = vsyncadd %s830, %s839
          %s841 = smul.addr %s25, 4
          %s842 = sadd.s32 %s837, %s841
          %s843 = smul.addr %s842, 128
          %s844 = scalar_lea.hbm %s3, %s843
          %s846 = sshll.u32 %s833, 4
          %s847 = int_to_ptr.vmem [resolvable:$true] %s846
          %849 = dma.vmem_to_hbm [thread:$0]  %s847, 256, %s844, %s830
        $region48: #{gemm_relu_div.1} parent=31 // pred_fallthru
          _
      $region32: #{gemm_relu_div.1} parent=5 // pred_fallthru
        _
      %p850 = scmp.le.s32.totalorder 2, %s16
      // Predicated region
      $region49: #{gemm_relu_div.1} parent=5 // pred_check
        %p851 = pneg %p850
      $region50: #{gemm_relu_div.1} parent=5 // pred_check_branch
        %853 = sbr.rel (%p851) target = $region52
      $region51: #{gemm_relu_div.1} parent=5 // pred_region
        %s854 = ssub.s32 %s16, 2
        // Predicated region
        $region53: #{gemm_relu_div.1} parent=51 // pred_check
          %p855 = pneg %p137
        $region54: #{gemm_relu_div.1} parent=51 // pred_check_branch
          %857 = sbr.rel (%p855) target = $region56
        $region55: #{gemm_relu_div.1} parent=51 // pred_region
          %s858 = sand.u32 %s122, 1
          %s859 = scalar_lea.sflag [#allocation4], %s858
          %s860 = sand.u32 %s122, 1
          %s861 = smul.addr %s860, 16
          %s862 = scalar_lea.vmem [#allocation8], %s861
          %863 = dma.done %s859, 256
        $region56: #{gemm_relu_div.1} parent=51 // pred_fallthru
          _
      $region52: #{gemm_relu_div.1} parent=5 // pred_fallthru
        _
    $region6: #{gemm_relu_div.1} parent=1 // loop_footer
      %s20 = sadd.s32 1, %s16
    $region7: #{gemm_relu_div.1} parent=1 // loop_footer_branch
      %15 = sbr.rel target = $region3
    $region8: #{gemm_relu_div.1} parent=1 // loop_exit
      _
    %864 = vsyncpa [#allocation3], 1
    %s865 = scalar_lea.sflag [#allocation3], 1
    %866 = vsyncpa %s865, 1
    %867 = vsyncpa [#allocation6], 1
    %s868 = scalar_lea.sflag [#allocation6], 1
    %869 = vsyncpa %s868, 1
    %870 = vsyncpa [#allocation4], 1
    %s871 = scalar_lea.sflag [#allocation4], 1
    %872 = vsyncpa %s871, 1

</llo_original>
